<compile_context>
chip_gen: v6e
topology: v6e:2x2x1
jax: 0.10.0
libtpu: 0.0.40
codegen_flags: <defaults>
</compile_context>

<pallas_src>
import jax
import jax.numpy as jnp
from jax.experimental import pallas as pl
from jax.experimental.pallas import tpu as pltpu

_LANE = 128
_BF16_SUBLANE = 16          # bf16 packs 16 sublanes per vreg


def _round_up(n, m):
    return ((n + m - 1) // m) * m


def _cdiv(a, b):
    return (a + b - 1) // b


def _actor_kernel(scale_ref,
                  x_ref,
                  w1_ref, b1_ref,
                  w2_ref, b2_ref,
                  w3_ref, b3_ref,
                  w4_ref, b4_ref,
                  out_ref):
    dot_dtype = w1_ref.dtype          # bf16 weights -> bf16 MXU inputs
    scale = scale_ref[0]              # SMEM scalar (no recompile per value)

    # Layer 1: Linear + ReLU.  x is already bf16 (wrapper cast), K = obs_dim.
    h = jnp.dot(x_ref[...], w1_ref[...], preferred_element_type=jnp.float32)
    h = jnp.maximum(h + b1_ref[...], 0.0)

    # Layer 2: Linear + ReLU
    h = jnp.dot(h.astype(dot_dtype), w2_ref[...],
                preferred_element_type=jnp.float32)
    h = jnp.maximum(h + b2_ref[...], 0.0)

    # Layer 3: Linear + ReLU
    h = jnp.dot(h.astype(dot_dtype), w3_ref[...],
                preferred_element_type=jnp.float32)
    h = jnp.maximum(h + b3_ref[...], 0.0)

    # Output layer: Linear + max_action * tanh, stored lane-dense in bf16.
    z = jnp.dot(h.astype(dot_dtype), w4_ref[...],
                preferred_element_type=jnp.float32)
    z = z + b4_ref[...]
    out_ref[...] = (scale * jnp.tanh(z)).astype(out_ref.dtype)


_PARAM_NAMES = ("w1", "b1", "w2", "b2", "w3", "b3", "w4", "b4")


def actor_forward(x, padded_params, max_action, act_dim, *,
                  batch_block=2048, grid_threshold=256):
    """x: [B, obs_dim] f32; padded_params from prepare_params(); -> [B, act_dim] f32."""
    B, obs_dim = x.shape
    obs_pad = padded_params["w1"].shape[0]
    a_pad = padded_params["w4"].shape[1]
    dot_dtype = padded_params["w1"].dtype

    # Batch rounding: only to the bf16 sublane-pack unit, never to batch_block.
    b_min = _round_up(max(B, 1), _BF16_SUBLANE)
    use_grid = b_min >= grid_threshold
    if use_grid:
        # >= 2 steps so v7x can use both TensorCores; tiles capped by batch_block.
        n_steps = max(2, _cdiv(b_min, batch_block))
        tb = _round_up(_cdiv(b_min, n_steps), _BF16_SUBLANE)
        b_pad = n_steps * tb
    else:
        n_steps, tb = 1, b_min
        b_pad = b_min

    # Minimal pads only (batch to tile multiple, obs to 16-multiple), then one
    # cast to bf16.  No 128-lane inflation of the obs axis.
    if (b_pad, obs_pad) != (B, obs_dim):
        x = jnp.pad(x, ((0, b_pad - B), (0, obs_pad - obs_dim)))
    x = x.astype(dot_dtype)

    scale = jnp.asarray([max_action], dtype=jnp.float32)
    args = (scale, x) + tuple(padded_params[n] for n in _PARAM_NAMES)

    smem_spec = pl.BlockSpec(memory_space=pltpu.MemorySpace.SMEM)

    if not use_grid:
        # Single invocation; everything resident in VMEM, no pipelining.
        in_specs = ([smem_spec]
                    + [pl.BlockSpec(memory_space=pltpu.MemorySpace.VMEM)] * 9)
        out = pl.pallas_call(
            _actor_kernel,
            out_shape=jax.ShapeDtypeStruct((b_pad, a_pad), dot_dtype),
            in_specs=in_specs,
            out_specs=pl.BlockSpec(memory_space=pltpu.MemorySpace.VMEM),
        )(*args)
    else:
        # Batch-tiled grid; weights use a constant index_map and stay resident.
        def batch_map(i):
            return (i, 0)

        def const_map(i):
            return (0, 0)

        weight_specs = [pl.BlockSpec(padded_params[name].shape, const_map)
                        for name in _PARAM_NAMES]
        in_specs = ([smem_spec,
                     pl.BlockSpec((tb, obs_pad), batch_map)]
                    + weight_specs)
        out = pl.pallas_call(
            _actor_kernel,
            out_shape=jax.ShapeDtypeStruct((b_pad, a_pad), dot_dtype),
            grid=(n_steps,),
            in_specs=in_specs,
            out_specs=pl.BlockSpec((tb, a_pad), batch_map),
            compiler_params=pltpu.CompilerParams(
                dimension_semantics=("parallel",),
                vmem_limit_bytes=32 * 1024 * 1024),
        )(*args)

    # Slice the real rows/columns and hand back f32 (tiny post-kernel cast).
    return out[:B, :act_dim].astype(jnp.float32)


def init_actor_params(key, obs_dim, act_dim, n_hiddens=64):
    """PyTorch nn.Linear-style init (uniform +/- 1/sqrt(fan_in)).
    Weights stored as [in, out] (transposed vs nn.Linear.weight), biases [1, out]."""
    dims = [(obs_dim, n_hiddens), (n_hiddens, n_hiddens),
            (n_hiddens, n_hiddens), (n_hiddens, act_dim)]
    params = {}
    keys = jax.random.split(key, 2 * len(dims))
    for i, (fan_in, fan_out) in enumerate(dims):
        bound = 1.0 / float(fan_in) ** 0.5
        params[f"w{i + 1}"] = jax.random.uniform(
            keys[2 * i], (fan_in, fan_out), jnp.float32, -bound, bound)
        params[f"b{i + 1}"] = jax.random.uniform(
            keys[2 * i + 1], (1, fan_out), jnp.float32, -bound, bound)
    return params


def prepare_params(params, *, weight_dtype=jnp.bfloat16, lane=_LANE):
    """Pad hidden/output widths to 128 lanes and cast weights to bf16.
    The observation (layer-1 K) axis is only rounded to the 16-row bf16 packing
    unit — NOT to 128 — so the input stream stays narrow.  Biases stay f32.
    Zero padding is exact: padded hidden units stay 0 through ReLU and padded
    output columns give tanh(0)=0, which the wrapper slices away."""
    padded = {}
    prev_out = None
    for i in range(1, 5):
        w = params[f"w{i}"].astype(jnp.float32)
        b = params[f"b{i}"].astype(jnp.float32)
        in_dim, out_dim = w.shape
        if prev_out is None:
            in_pad = _round_up(in_dim, _BF16_SUBLANE)   # obs axis: minimal pad
        else:
            in_pad = prev_out
        out_pad = _round_up(out_dim, lane)
        w_p = jnp.zeros((in_pad, out_pad), jnp.float32).at[:in_dim, :out_dim].set(w)
        b_p = jnp.zeros((1, out_pad), jnp.float32).at[:, :out_dim].set(b)
        padded[f"w{i}"] = w_p.astype(weight_dtype)
        padded[f"b{i}"] = b_p
        prev_out = out_pad
    return padded


def actor_reference_f32(x, params, max_action):
    """Pure-JAX f32 reference matching the PyTorch module semantics."""
    h = jnp.maximum(x @ params["w1"] + params["b1"], 0.0)
    h = jnp.maximum(h @ params["w2"] + params["b2"], 0.0)
    h = jnp.maximum(h @ params["w3"] + params["b3"], 0.0)
    z = h @ params["w4"] + params["b4"]
    return max_action * jnp.tanh(z)


def actor_reference_matched(x, padded_params, max_action, act_dim):
    """Pure-JAX reference using the exact bf16-weight / f32-accumulate /
    bf16-output path of the kernel."""
    dt = padded_params["w1"].dtype
    obs_pad = padded_params["w1"].shape[0]
    if obs_pad != x.shape[1]:
        x = jnp.pad(x, ((0, 0), (0, obs_pad - x.shape[1])))
    h = x.astype(dt)
    for i in range(1, 4):
        h = jnp.dot(h, padded_params[f"w{i}"], preferred_element_type=jnp.float32)
        h = jnp.maximum(h + padded_params[f"b{i}"], 0.0).astype(dt)
    z = jnp.dot(h, padded_params["w4"], preferred_element_type=jnp.float32)
    z = z + padded_params["b4"]
    out = (max_action * jnp.tanh(z)).astype(dt)
    return out[:, :act_dim].astype(jnp.float32)


if __name__ == "__main__":
    # Synthetic MADDPG config: obs_shape[agent_id]=16, action_shape[agent_id]=4,
    # high_action=1.0, n_hiddens=64.
    obs_dim, act_dim, n_hiddens = 16, 4, 64
    max_action = 1.0

    key = jax.random.PRNGKey(0)
    k_params, k_x1, k_x2 = jax.random.split(key, 3)
    params = init_actor_params(k_params, obs_dim, act_dim, n_hiddens)
    padded_params = prepare_params(params)

    # --- Small-batch (single invocation, no grid) path ---
    batch = 2
    x = jax.random.normal(k_x1, (batch, obs_dim), dtype=jnp.float32)
    out = jax.block_until_ready(actor_forward(x, padded_params, max_action, act_dim))
    assert out.shape == (batch, act_dim), out.shape
    ref_m = actor_reference_matched(x, padded_params, max_action, act_dim)
    assert jnp.allclose(out, ref_m, atol=1e-2, rtol=1e-2), \
        "small-batch mismatch vs matched-precision reference"
    ref_f = actor_reference_f32(x, params, max_action)
    assert jnp.allclose(out, ref_f, atol=3e-2, rtol=3e-2), \
        "small-batch mismatch vs f32 reference"

    # --- Grid (batch-tiled, 'parallel') path ---
    batch_big = 300   # -> b_pad=320, 2 grid steps of 160 rows each
    x_big = jax.random.normal(k_x2, (batch_big, obs_dim), dtype=jnp.float32)
    out_big = jax.block_until_ready(
        actor_forward(x_big, padded_params, max_action, act_dim))
    assert out_big.shape == (batch_big, act_dim), out_big.shape
    ref_m_big = actor_reference_matched(x_big, padded_params, max_action, act_dim)
    assert jnp.allclose(out_big, ref_m_big, atol=1e-2, rtol=1e-2), \
        "grid-path mismatch vs matched-precision reference"
    ref_f_big = actor_reference_f32(x_big, params, max_action)
    assert jnp.allclose(out_big, ref_f_big, atol=3e-2, rtol=3e-2), \
        "grid-path mismatch vs f32 reference"

    print("KERNEL_OK")
</pallas_src>

<mosaic_0001>
module attributes {stable_mosaic.version = 11 : i64} {
  func.func @_actor_kernel(%arg0: memref<1xf32, #tpu.memory_space<smem>>, %arg1: memref<16x16xbf16, #tpu.memory_space<vmem>>, %arg2: memref<16x128xbf16, #tpu.memory_space<vmem>>, %arg3: memref<1x128xf32, #tpu.memory_space<vmem>>, %arg4: memref<128x128xbf16, #tpu.memory_space<vmem>>, %arg5: memref<1x128xf32, #tpu.memory_space<vmem>>, %arg6: memref<128x128xbf16, #tpu.memory_space<vmem>>, %arg7: memref<1x128xf32, #tpu.memory_space<vmem>>, %arg8: memref<128x128xbf16, #tpu.memory_space<vmem>>, %arg9: memref<1x128xf32, #tpu.memory_space<vmem>>, %arg10: memref<16x128xbf16, #tpu.memory_space<vmem>>) attributes {dimension_semantics = [], scalar_prefetch = 0 : i64, scratch_operands = 0 : i64, tpu.core_type = #tpu.core_type<tc>} {
    %c0 = arith.constant 0 : index
    %0 = memref.load %arg0[%c0] : memref<1xf32, #tpu.memory_space<smem>>
    %c0_0 = arith.constant 0 : index
    %c0_1 = arith.constant 0 : index
    %1 = vector.load %arg1[%c0_0, %c0_1] : memref<16x16xbf16, #tpu.memory_space<vmem>>, vector<16x16xbf16>
    %c0_2 = arith.constant 0 : index
    %c0_3 = arith.constant 0 : index
    %2 = vector.load %arg2[%c0_2, %c0_3] : memref<16x128xbf16, #tpu.memory_space<vmem>>, vector<16x128xbf16>
    %cst = arith.constant dense<0.000000e+00> : vector<16x128xf32>
    %3 = tpu.matmul %1, %2, %cst {dimension_numbers = #tpu.dot_dimension_numbers<[1], [0], [0], [1], [0, 0, 1, 1], [], []>} : vector<16x16xbf16>, vector<16x128xbf16>, vector<16x128xf32> -> vector<16x128xf32>
    %c0_4 = arith.constant 0 : index
    %c0_5 = arith.constant 0 : index
    %4 = vector.load %arg3[%c0_4, %c0_5] : memref<1x128xf32, #tpu.memory_space<vmem>>, vector<1x128xf32>
    %5 = vector.broadcast %4 : vector<1x128xf32> to vector<16x128xf32>
    %6 = arith.addf %3, %5 : vector<16x128xf32>
    %cst_6 = arith.constant 0.000000e+00 : f32
    %7 = vector.broadcast %cst_6 : f32 to vector<16x128xf32>
    %8 = arith.maximumf %6, %7 : vector<16x128xf32>
    %9 = arith.truncf %8 : vector<16x128xf32> to vector<16x128xbf16>
    %c0_7 = arith.constant 0 : index
    %c0_8 = arith.constant 0 : index
    %10 = vector.load %arg4[%c0_7, %c0_8] : memref<128x128xbf16, #tpu.memory_space<vmem>>, vector<128x128xbf16>
    %cst_9 = arith.constant dense<0.000000e+00> : vector<16x128xf32>
    %11 = tpu.matmul %9, %10, %cst_9 {dimension_numbers = #tpu.dot_dimension_numbers<[1], [0], [0], [1], [0, 0, 1, 1], [], []>} : vector<16x128xbf16>, vector<128x128xbf16>, vector<16x128xf32> -> vector<16x128xf32>
    %c0_10 = arith.constant 0 : index
    %c0_11 = arith.constant 0 : index
    %12 = vector.load %arg5[%c0_10, %c0_11] : memref<1x128xf32, #tpu.memory_space<vmem>>, vector<1x128xf32>
    %13 = vector.broadcast %12 : vector<1x128xf32> to vector<16x128xf32>
    %14 = arith.addf %11, %13 : vector<16x128xf32>
    %cst_12 = arith.constant 0.000000e+00 : f32
    %15 = vector.broadcast %cst_12 : f32 to vector<16x128xf32>
    %16 = arith.maximumf %14, %15 : vector<16x128xf32>
    %17 = arith.truncf %16 : vector<16x128xf32> to vector<16x128xbf16>
    %c0_13 = arith.constant 0 : index
    %c0_14 = arith.constant 0 : index
    %18 = vector.load %arg6[%c0_13, %c0_14] : memref<128x128xbf16, #tpu.memory_space<vmem>>, vector<128x128xbf16>
    %cst_15 = arith.constant dense<0.000000e+00> : vector<16x128xf32>
    %19 = tpu.matmul %17, %18, %cst_15 {dimension_numbers = #tpu.dot_dimension_numbers<[1], [0], [0], [1], [0, 0, 1, 1], [], []>} : vector<16x128xbf16>, vector<128x128xbf16>, vector<16x128xf32> -> vector<16x128xf32>
    %c0_16 = arith.constant 0 : index
    %c0_17 = arith.constant 0 : index
    %20 = vector.load %arg7[%c0_16, %c0_17] : memref<1x128xf32, #tpu.memory_space<vmem>>, vector<1x128xf32>
    %21 = vector.broadcast %20 : vector<1x128xf32> to vector<16x128xf32>
    %22 = arith.addf %19, %21 : vector<16x128xf32>
    %cst_18 = arith.constant 0.000000e+00 : f32
    %23 = vector.broadcast %cst_18 : f32 to vector<16x128xf32>
    %24 = arith.maximumf %22, %23 : vector<16x128xf32>
    %25 = arith.truncf %24 : vector<16x128xf32> to vector<16x128xbf16>
    %c0_19 = arith.constant 0 : index
    %c0_20 = arith.constant 0 : index
    %26 = vector.load %arg8[%c0_19, %c0_20] : memref<128x128xbf16, #tpu.memory_space<vmem>>, vector<128x128xbf16>
    %cst_21 = arith.constant dense<0.000000e+00> : vector<16x128xf32>
    %27 = tpu.matmul %25, %26, %cst_21 {dimension_numbers = #tpu.dot_dimension_numbers<[1], [0], [0], [1], [0, 0, 1, 1], [], []>} : vector<16x128xbf16>, vector<128x128xbf16>, vector<16x128xf32> -> vector<16x128xf32>
    %c0_22 = arith.constant 0 : index
    %c0_23 = arith.constant 0 : index
    %28 = vector.load %arg9[%c0_22, %c0_23] : memref<1x128xf32, #tpu.memory_space<vmem>>, vector<1x128xf32>
    %29 = vector.broadcast %28 : vector<1x128xf32> to vector<16x128xf32>
    %30 = arith.addf %27, %29 : vector<16x128xf32>
    %31 = math.tanh %30 : vector<16x128xf32>
    %32 = vector.broadcast %0 : f32 to vector<16x128xf32>
    %33 = arith.mulf %32, %31 : vector<16x128xf32>
    %34 = arith.truncf %33 : vector<16x128xf32> to vector<16x128xbf16>
    %c0_24 = arith.constant 0 : index
    %c0_25 = arith.constant 0 : index
    %35 = vector.load %arg10[%c0_24, %c0_25] : memref<16x128xbf16, #tpu.memory_space<vmem>>, vector<16x128xbf16>
    tpu.vector_store %arg10[%c0_24, %c0_25], %34 {strides = array<i32>} : memref<16x128xbf16, #tpu.memory_space<vmem>>, vector<16x128xbf16>,
    return
  }
}

</mosaic_0001>

<llo_original>
// kernel: tpu_custom_call.1
$region0: #{tpu_custom_call.1}
  #allocation0 [shape = 'u32[]', space=smem, size = 0x4, offset = 0x4, fixed_abs, tag = 'smem constant byte address 0x4 - core index']
  #allocation1 [shape = 'u32[144,128]{1,0:T(1,128)}', space=vmem, size = 0x12000, scoped, tag = 'internal scratch']
  #allocation2 [shape = 'f32[1]{0:T(128)S(6)}', space=smem, size = 0x200, scoped, tag = 'scoped memory for tpu_custom_call.1']
  %s0 = inlined_call_operand.<no memory space> [shape: f32[1], index: 0, kind: input, shape index: {}]
  %s1 = inlined_call_operand.hbm [shape: bf16[16,16], index: 1, kind: input, shape index: {}]
  %s2 = inlined_call_operand.hbm [shape: bf16[16,128], index: 2, kind: input, shape index: {}]
  %s3 = inlined_call_operand.vmem [shape: f32[1,128], index: 3, kind: input, shape index: {}]
  %s4 = inlined_call_operand.hbm [shape: bf16[128,128], index: 4, kind: input, shape index: {}]
  %s5 = inlined_call_operand.vmem [shape: f32[1,128], index: 5, kind: input, shape index: {}]
  %s6 = inlined_call_operand.hbm [shape: bf16[128,128], index: 6, kind: input, shape index: {}]
  %s7 = inlined_call_operand.vmem [shape: f32[1,128], index: 7, kind: input, shape index: {}]
  %s8 = inlined_call_operand.hbm [shape: bf16[128,128], index: 8, kind: input, shape index: {}]
  %s9 = inlined_call_operand.vmem [shape: f32[1,128], index: 9, kind: input, shape index: {}]
  %s10 = inlined_call_operand.hbm [shape: bf16[16,128], index: 10, kind: output, shape index: {}]
  %s11 = sld [smem:[#allocation0]]
  $region70: #{tpu_custom_call.1} parent=0
    _
  %s13 = ssub.s32 1, %s11
  %s14 = scalar_select 0, %s13, %s11
  %15 = sst [smem:[#allocation2]] %s0
  $region1: #{tpu_custom_call.1} parent=0
    #allocation3 [shape = 'u8[4096]{0}', space=vmem, size = 0x1000, scoped, tag = 'input window, operand 1, single buffered']
    #allocation4 [shape = 's32[1]{0}', space=sflag, size = 0x4, scoped, tag = 'scoped memory for tpu_custom_call.1']
    #allocation5 [shape = 's32[1]{0}', space=sflag, size = 0x4, scoped, tag = 'scoped memory for tpu_custom_call.1']
    #allocation6 [shape = 'u8[4096]{0}', space=vmem, size = 0x1000, scoped, tag = 'input window, operand 2, single buffered']
    #allocation7 [shape = 's32[1]{0}', space=sflag, size = 0x4, scoped, tag = 'scoped memory for tpu_custom_call.1']
    #allocation8 [shape = 'u8[32768]{0}', space=vmem, size = 0x8000, scoped, tag = 'input window, operand 4, single buffered']
    #allocation9 [shape = 'u8[32768]{0}', space=vmem, size = 0x8000, scoped, tag = 'input window, operand 6, single buffered']
    #allocation10 [shape = 's32[1]{0}', space=sflag, size = 0x4, scoped, tag = 'scoped memory for tpu_custom_call.1']
    #allocation11 [shape = 'u8[32768]{0}', space=vmem, size = 0x8000, scoped, tag = 'input window, operand 8, single buffered']
    #allocation12 [shape = 'u8[4096]{0}', space=vmem, size = 0x1000, scoped, tag = 'output window, operand 0, single buffered']
    %16 = vsyncpa [#allocation4], 0
    %17 = vsyncpa [#allocation7], 0
    %18 = vsyncpa [#allocation10], 0
    %19 = vsyncpa [#allocation5], 0
    // Predicated region
    $region2: #{tpu_custom_call.1} parent=1 // pred_check
      _
    $region3: #{tpu_custom_call.1} parent=1 // pred_check_branch
      %21 = sbr.rel (0) target = $region5
    $region4: #{tpu_custom_call.1} parent=1 // pred_region
      _
    $region5: #{tpu_custom_call.1} parent=1 // pred_fallthru
      _
    // Predicated region
    $region6: #{tpu_custom_call.1} parent=1 // pred_check
      _
    $region7: #{tpu_custom_call.1} parent=1 // pred_check_branch
      %23 = sbr.rel (0) target = $region9
    $region8: #{tpu_custom_call.1} parent=1 // pred_region
      %s25 = ssub.s32 128, 128
      %26 = vsyncadd [#allocation4], %s25
      %s27 = sshll.u32 [#allocation3], 4
      %s28 = int_to_ptr.vmem [resolvable:$true] %s27
      %33 = dma.hbm_to_vmem [thread:$0]  %s1, 128, %s28, [#allocation4], 64, 64, 4
    $region9: #{tpu_custom_call.1} parent=1 // pred_fallthru
      _
    // Predicated region
    $region10: #{tpu_custom_call.1} parent=1 // pred_check
      _
    $region11: #{tpu_custom_call.1} parent=1 // pred_check_branch
      %35 = sbr.rel (0) target = $region13
    $region12: #{tpu_custom_call.1} parent=1 // pred_region
      %s37 = ssub.s32 128, 128
      %38 = vsyncadd [#allocation7], %s37
      %s39 = sshll.u32 [#allocation6], 4
      %s40 = int_to_ptr.vmem [resolvable:$true] %s39
      %45 = dma.hbm_to_vmem [thread:$0]  %s2, 128, %s40, [#allocation7], 64, 64, 4
    $region13: #{tpu_custom_call.1} parent=1 // pred_fallthru
      _
    // Predicated region
    $region14: #{tpu_custom_call.1} parent=1 // pred_check
      _
    $region15: #{tpu_custom_call.1} parent=1 // pred_check_branch
      %47 = sbr.rel (0) target = $region17
    $region16: #{tpu_custom_call.1} parent=1 // pred_region
      _
    $region17: #{tpu_custom_call.1} parent=1 // pred_fallthru
      _
    // Predicated region
    $region18: #{tpu_custom_call.1} parent=1 // pred_check
      _
    $region19: #{tpu_custom_call.1} parent=1 // pred_check_branch
      %49 = sbr.rel (0) target = $region21
    $region20: #{tpu_custom_call.1} parent=1 // pred_region
      %s51 = ssub.s32 1024, 1024
      %52 = vsyncadd [#allocation7], %s51
      %s53 = sshll.u32 [#allocation8], 4
      %s54 = int_to_ptr.vmem [resolvable:$true] %s53
      %59 = dma.hbm_to_vmem [thread:$0]  %s4, 1024, %s54, [#allocation7], 64, 64, 4
    $region21: #{tpu_custom_call.1} parent=1 // pred_fallthru
      _
    // Predicated region
    $region22: #{tpu_custom_call.1} parent=1 // pred_check
      _
    $region23: #{tpu_custom_call.1} parent=1 // pred_check_branch
      %61 = sbr.rel (0) target = $region25
    $region24: #{tpu_custom_call.1} parent=1 // pred_region
      _
    $region25: #{tpu_custom_call.1} parent=1 // pred_fallthru
      _
    // Predicated region
    $region26: #{tpu_custom_call.1} parent=1 // pred_check
      _
    $region27: #{tpu_custom_call.1} parent=1 // pred_check_branch
      %63 = sbr.rel (0) target = $region29
    $region28: #{tpu_custom_call.1} parent=1 // pred_region
      %s65 = ssub.s32 1024, 1024
      %66 = vsyncadd [#allocation10], %s65
      %s67 = sshll.u32 [#allocation9], 4
      %s68 = int_to_ptr.vmem [resolvable:$true] %s67
      %73 = dma.hbm_to_vmem [thread:$0]  %s6, 1024, %s68, [#allocation10], 64, 64, 4
    $region29: #{tpu_custom_call.1} parent=1 // pred_fallthru
      _
    // Predicated region
    $region30: #{tpu_custom_call.1} parent=1 // pred_check
      _
    $region31: #{tpu_custom_call.1} parent=1 // pred_check_branch
      %75 = sbr.rel (0) target = $region33
    $region32: #{tpu_custom_call.1} parent=1 // pred_region
      _
    $region33: #{tpu_custom_call.1} parent=1 // pred_fallthru
      _
    // Predicated region
    $region34: #{tpu_custom_call.1} parent=1 // pred_check
      _
    $region35: #{tpu_custom_call.1} parent=1 // pred_check_branch
      %77 = sbr.rel (0) target = $region37
    $region36: #{tpu_custom_call.1} parent=1 // pred_region
      %s79 = ssub.s32 1024, 1024
      %80 = vsyncadd [#allocation10], %s79
      %s81 = sshll.u32 [#allocation11], 4
      %s82 = int_to_ptr.vmem [resolvable:$true] %s81
      %87 = dma.hbm_to_vmem [thread:$0]  %s8, 1024, %s82, [#allocation10], 64, 64, 4
    $region37: #{tpu_custom_call.1} parent=1 // pred_fallthru
      _
    // Predicated region
    $region38: #{tpu_custom_call.1} parent=1 // pred_check
      _
    $region39: #{tpu_custom_call.1} parent=1 // pred_check_branch
      %89 = sbr.rel (0) target = $region41
    $region40: #{tpu_custom_call.1} parent=1 // pred_region
      _
    $region41: #{tpu_custom_call.1} parent=1 // pred_fallthru
      _
    // Predicated region
    $region42: #{tpu_custom_call.1} parent=1 // pred_check
      _
    $region43: #{tpu_custom_call.1} parent=1 // pred_check_branch
      %91 = sbr.rel (0) target = $region45
    $region44: #{tpu_custom_call.1} parent=1 // pred_region
      %92 = dma.done [#allocation4], 128
    $region45: #{tpu_custom_call.1} parent=1 // pred_fallthru
      _
    // Predicated region
    $region46: #{tpu_custom_call.1} parent=1 // pred_check
      _
    $region47: #{tpu_custom_call.1} parent=1 // pred_check_branch
      %94 = sbr.rel (0) target = $region49
    $region48: #{tpu_custom_call.1} parent=1 // pred_region
      %95 = dma.done [#allocation7], 128
    $region49: #{tpu_custom_call.1} parent=1 // pred_fallthru
      _
    // Predicated region
    $region50: #{tpu_custom_call.1} parent=1 // pred_check
      _
    $region51: #{tpu_custom_call.1} parent=1 // pred_check_branch
      %97 = sbr.rel (0) target = $region53
    $region52: #{tpu_custom_call.1} parent=1 // pred_region
      %98 = dma.done [#allocation7], 1024
    $region53: #{tpu_custom_call.1} parent=1 // pred_fallthru
      _
    // Predicated region
    $region54: #{tpu_custom_call.1} parent=1 // pred_check
      _
    $region55: #{tpu_custom_call.1} parent=1 // pred_check_branch
      %100 = sbr.rel (0) target = $region57
    $region56: #{tpu_custom_call.1} parent=1 // pred_region
      %101 = dma.done [#allocation10], 1024
    $region57: #{tpu_custom_call.1} parent=1 // pred_fallthru
      _
    // Predicated region
    $region58: #{tpu_custom_call.1} parent=1 // pred_check
      _
    $region59: #{tpu_custom_call.1} parent=1 // pred_check_branch
      %103 = sbr.rel (0) target = $region61
    $region60: #{tpu_custom_call.1} parent=1 // pred_region
      %104 = dma.done [#allocation10], 1024
    $region61: #{tpu_custom_call.1} parent=1 // pred_fallthru
      _
    %s106 = sld [smem:[#allocation2]]
    %v107 = vld [vmem:[#allocation3] sm:$0xf]
    %v108 = vld [vmem:[#allocation3 + $0x4] sm:$0xf]
    %v109 = vld [vmem:[#allocation6] sm:$0xf]
    %v110 = vld [vmem:[#allocation6 + $0x4] sm:$0xf]
    %v111 = vld [vmem:[%s3] sm:$0x1]
    %v113 = vlaneseq
    %v114 = vshrl.u32 %v113, 7
    %v115 = vsub.s32 0, %v114
    %v116 = vrot.slane %v111, %v115
    %v120 = vunpack.c.l.b16 %v107
    %v121 = vunpack.c.l.b16 %v108
    %v122 = vpack.c.b16 %v121, %v120
    %v125 = vunpack.c.l.b16 %v109
    %v126 = vunpack.c.l.b16 %v110
    %v127 = vpack.c.b16 %v126, %v125
    %vm129 = vcmask 130048
    %v131 = vsel %vm129, %v122, 0
    %133 = vmatprep.subr.bf16.mxu0 0
    %134 = vmatpush1.bf16.msra.mxu0 0
    %135 = vmatprep.subr.bf16.mxu0 0
    %136 = vmatpush1.bf16.msra.mxu0 0
    %137 = vmatprep.subr.bf16.mxu0 0
    %138 = vmatpush1.bf16.msra.mxu0 0
    %139 = vmatprep.subr.bf16.mxu0 0
    %140 = vmatpush1.bf16.msra.mxu0 0
    %141 = vmatprep.subr.bf16.mxu0 0
    %142 = vmatpush1.bf16.msra.mxu0 0
    %143 = vmatprep.subr.bf16.mxu0 0
    %144 = vmatpush1.bf16.msra.mxu0 0
    %145 = vmatprep.subr.bf16.mxu0 0
    %146 = vmatpush1.bf16.msra.mxu0 0
    %147 = vmatprep.subr.bf16.mxu0 0
    %148 = vmatpush1.bf16.msra.mxu0 %v127
    %149 = vmatprep.subr.bf16.mxu0 0
    %150 = vmatpush2.bf16.msra.mxu0 0
    %151 = vmatprep.subr.bf16.mxu0 0
    %152 = vmatpush2.bf16.msra.mxu0 0
    %153 = vmatprep.subr.bf16.mxu0 0
    %154 = vmatpush2.bf16.msra.mxu0 0
    %155 = vmatprep.subr.bf16.mxu0 0
    %156 = vmatpush2.bf16.msra.mxu0 0
    %157 = vmatprep.subr.bf16.mxu0 0
    %158 = vmatpush2.bf16.msra.mxu0 0
    %159 = vmatprep.subr.bf16.mxu0 0
    %160 = vmatpush2.bf16.msra.mxu0 0
    %161 = vmatprep.subr.bf16.mxu0 0
    %162 = vmatpush2.bf16.msra.mxu0 0
    %163 = vmatprep.subr.bf16.mxu0 0
    %164 = vmatpush2.bf16.msra.mxu0 0
    %165 = vmatprep.mubr.bf16.mxu0 0
    %166 = vmatmul.mubr.bf16.gmra.mxu0 %v131
    %v167 = vpop.f32.mrf.mxu0
    %v168 = vadd.f32 %v116, %v167
    %v169 = vpop.f32.mrf.mxu0
    %v170 = vpop.f32.mrf.mxu0
    %v171 = vadd.f32 %v116, %v170
    %v172 = vpop.f32.mrf.mxu0
    %173 = vdwg.mxu0
    %v174 = vmax.f32 %v168, 0.0
    %v175 = vmax.f32 %v171, 0.0
    %v176 = vpack.c.bf16 %v175, %v174
    %v177 = vld [vmem:[#allocation8] sm:$0xf]
    %v178 = vld [vmem:[#allocation8 + $0x4] sm:$0xf]
    %v179 = vld [vmem:[#allocation8 + $0x8] sm:$0xf]
    %v180 = vld [vmem:[#allocation8 + $0xc] sm:$0xf]
    %v181 = vld [vmem:[#allocation8 + $0x10] sm:$0xf]
    %v182 = vld [vmem:[#allocation8 + $0x14] sm:$0xf]
    %v183 = vld [vmem:[#allocation8 + $0x18] sm:$0xf]
    %v184 = vld [vmem:[#allocation8 + $0x1c] sm:$0xf]
    %v185 = vld [vmem:[#allocation8 + $0x20] sm:$0xf]
    %v186 = vld [vmem:[#allocation8 + $0x24] sm:$0xf]
    %v187 = vld [vmem:[#allocation8 + $0x28] sm:$0xf]
    %v188 = vld [vmem:[#allocation8 + $0x2c] sm:$0xf]
    %v189 = vld [vmem:[#allocation8 + $0x30] sm:$0xf]
    %v190 = vld [vmem:[#allocation8 + $0x34] sm:$0xf]
    %v191 = vld [vmem:[#allocation8 + $0x38] sm:$0xf]
    %v192 = vld [vmem:[#allocation8 + $0x3c] sm:$0xf]
    %v193 = vld [vmem:[%s5] sm:$0x1]
    %v195 = vlaneseq
    %v196 = vshrl.u32 %v195, 7
    %v197 = vsub.s32 0, %v196
    %v198 = vrot.slane %v193, %v197
    %v216 = vunpack.c.l.b16 %v177
    %v217 = vunpack.c.l.b16 %v178
    %v218 = vunpack.c.l.b16 %v179
    %v219 = vunpack.c.l.b16 %v180
    %v220 = vunpack.c.l.b16 %v181
    %v221 = vunpack.c.l.b16 %v182
    %v222 = vunpack.c.l.b16 %v183
    %v223 = vunpack.c.l.b16 %v184
    %v224 = vunpack.c.l.b16 %v185
    %v225 = vunpack.c.l.b16 %v186
    %v226 = vunpack.c.l.b16 %v187
    %v227 = vunpack.c.l.b16 %v188
    %v228 = vunpack.c.l.b16 %v189
    %v229 = vunpack.c.l.b16 %v190
    %v230 = vunpack.c.l.b16 %v191
    %v231 = vunpack.c.l.b16 %v192
    %v232 = vpack.c.b16 %v217, %v216
    %v233 = vpack.c.b16 %v219, %v218
    %v234 = vpack.c.b16 %v221, %v220
    %v235 = vpack.c.b16 %v223, %v222
    %v236 = vpack.c.b16 %v225, %v224
    %v237 = vpack.c.b16 %v227, %v226
    %v238 = vpack.c.b16 %v229, %v228
    %v239 = vpack.c.b16 %v231, %v230
    %248 = vmatprep.subr.bf16.mxu0 0
    %249 = vmatpush1.bf16.msra.mxu0 %v239
    %250 = vmatprep.subr.bf16.mxu0 0
    %251 = vmatpush1.bf16.msra.mxu0 %v238
    %252 = vmatprep.subr.bf16.mxu0 0
    %253 = vmatpush1.bf16.msra.mxu0 %v237
    %254 = vmatprep.subr.bf16.mxu0 0
    %255 = vmatpush1.bf16.msra.mxu0 %v236
    %256 = vmatprep.subr.bf16.mxu0 0
    %257 = vmatpush1.bf16.msra.mxu0 %v235
    %258 = vmatprep.subr.bf16.mxu0 0
    %259 = vmatpush1.bf16.msra.mxu0 %v234
    %260 = vmatprep.subr.bf16.mxu0 0
    %261 = vmatpush1.bf16.msra.mxu0 %v233
    %262 = vmatprep.subr.bf16.mxu0 0
    %263 = vmatpush1.bf16.msra.mxu0 %v232
    %264 = vmatprep.subr.bf16.mxu0 0
    %265 = vmatpush2.bf16.msra.mxu0 0
    %266 = vmatprep.subr.bf16.mxu0 0
    %267 = vmatpush2.bf16.msra.mxu0 0
    %268 = vmatprep.subr.bf16.mxu0 0
    %269 = vmatpush2.bf16.msra.mxu0 0
    %270 = vmatprep.subr.bf16.mxu0 0
    %271 = vmatpush2.bf16.msra.mxu0 0
    %272 = vmatprep.subr.bf16.mxu0 0
    %273 = vmatpush2.bf16.msra.mxu0 0
    %274 = vmatprep.subr.bf16.mxu0 0
    %275 = vmatpush2.bf16.msra.mxu0 0
    %276 = vmatprep.subr.bf16.mxu0 0
    %277 = vmatpush2.bf16.msra.mxu0 0
    %278 = vmatprep.subr.bf16.mxu0 0
    %279 = vmatpush2.bf16.msra.mxu0 0
    %280 = vmatprep.mubr.bf16.mxu0 0
    %281 = vmatmul.mubr.bf16.gmra.mxu0 %v176
    %v282 = vpop.f32.mrf.mxu0
    %v283 = vadd.f32 %v198, %v282
    %v284 = vpop.f32.mrf.mxu0
    %v285 = vpop.f32.mrf.mxu0
    %v286 = vadd.f32 %v198, %v285
    %v287 = vpop.f32.mrf.mxu0
    %288 = vdwg.mxu0
    %v289 = vmax.f32 %v283, 0.0
    %v290 = vmax.f32 %v286, 0.0
    %v291 = vpack.c.bf16 %v290, %v289
    %v292 = vld [vmem:[#allocation9] sm:$0xf]
    %v293 = vld [vmem:[#allocation9 + $0x4] sm:$0xf]
    %v294 = vld [vmem:[#allocation9 + $0x8] sm:$0xf]
    %v295 = vld [vmem:[#allocation9 + $0xc] sm:$0xf]
    %v296 = vld [vmem:[#allocation9 + $0x10] sm:$0xf]
    %v297 = vld [vmem:[#allocation9 + $0x14] sm:$0xf]
    %v298 = vld [vmem:[#allocation9 + $0x18] sm:$0xf]
    %v299 = vld [vmem:[#allocation9 + $0x1c] sm:$0xf]
    %v300 = vld [vmem:[#allocation9 + $0x20] sm:$0xf]
    %v301 = vld [vmem:[#allocation9 + $0x24] sm:$0xf]
    %v302 = vld [vmem:[#allocation9 + $0x28] sm:$0xf]
    %v303 = vld [vmem:[#allocation9 + $0x2c] sm:$0xf]
    %v304 = vld [vmem:[#allocation9 + $0x30] sm:$0xf]
    %v305 = vld [vmem:[#allocation9 + $0x34] sm:$0xf]
    %v306 = vld [vmem:[#allocation9 + $0x38] sm:$0xf]
    %v307 = vld [vmem:[#allocation9 + $0x3c] sm:$0xf]
    %v308 = vld [vmem:[%s7] sm:$0x1]
    %v310 = vlaneseq
    %v311 = vshrl.u32 %v310, 7
    %v312 = vsub.s32 0, %v311
    %v313 = vrot.slane %v308, %v312
    %v331 = vunpack.c.l.b16 %v292
    %v332 = vunpack.c.l.b16 %v293
    %v333 = vunpack.c.l.b16 %v294
    %v334 = vunpack.c.l.b16 %v295
    %v335 = vunpack.c.l.b16 %v296
    %v336 = vunpack.c.l.b16 %v297
    %v337 = vunpack.c.l.b16 %v298
    %v338 = vunpack.c.l.b16 %v299
    %v339 = vunpack.c.l.b16 %v300
    %v340 = vunpack.c.l.b16 %v301
    %v341 = vunpack.c.l.b16 %v302
    %v342 = vunpack.c.l.b16 %v303
    %v343 = vunpack.c.l.b16 %v304
    %v344 = vunpack.c.l.b16 %v305
    %v345 = vunpack.c.l.b16 %v306
    %v346 = vunpack.c.l.b16 %v307
    %v347 = vpack.c.b16 %v332, %v331
    %v348 = vpack.c.b16 %v334, %v333
    %v349 = vpack.c.b16 %v336, %v335
    %v350 = vpack.c.b16 %v338, %v337
    %v351 = vpack.c.b16 %v340, %v339
    %v352 = vpack.c.b16 %v342, %v341
    %v353 = vpack.c.b16 %v344, %v343
    %v354 = vpack.c.b16 %v346, %v345
    %363 = vmatprep.subr.bf16.mxu0 0
    %364 = vmatpush1.bf16.msra.mxu0 %v354
    %365 = vmatprep.subr.bf16.mxu0 0
    %366 = vmatpush1.bf16.msra.mxu0 %v353
    %367 = vmatprep.subr.bf16.mxu0 0
    %368 = vmatpush1.bf16.msra.mxu0 %v352
    %369 = vmatprep.subr.bf16.mxu0 0
    %370 = vmatpush1.bf16.msra.mxu0 %v351
    %371 = vmatprep.subr.bf16.mxu0 0
    %372 = vmatpush1.bf16.msra.mxu0 %v350
    %373 = vmatprep.subr.bf16.mxu0 0
    %374 = vmatpush1.bf16.msra.mxu0 %v349
    %375 = vmatprep.subr.bf16.mxu0 0
    %376 = vmatpush1.bf16.msra.mxu0 %v348
    %377 = vmatprep.subr.bf16.mxu0 0
    %378 = vmatpush1.bf16.msra.mxu0 %v347
    %379 = vmatprep.subr.bf16.mxu0 0
    %380 = vmatpush2.bf16.msra.mxu0 0
    %381 = vmatprep.subr.bf16.mxu0 0
    %382 = vmatpush2.bf16.msra.mxu0 0
    %383 = vmatprep.subr.bf16.mxu0 0
    %384 = vmatpush2.bf16.msra.mxu0 0
    %385 = vmatprep.subr.bf16.mxu0 0
    %386 = vmatpush2.bf16.msra.mxu0 0
    %387 = vmatprep.subr.bf16.mxu0 0
    %388 = vmatpush2.bf16.msra.mxu0 0
    %389 = vmatprep.subr.bf16.mxu0 0
    %390 = vmatpush2.bf16.msra.mxu0 0
    %391 = vmatprep.subr.bf16.mxu0 0
    %392 = vmatpush2.bf16.msra.mxu0 0
    %393 = vmatprep.subr.bf16.mxu0 0
    %394 = vmatpush2.bf16.msra.mxu0 0
    %395 = vmatprep.mubr.bf16.mxu0 0
    %396 = vmatmul.mubr.bf16.gmra.mxu0 %v291
    %v397 = vpop.f32.mrf.mxu0
    %v398 = vadd.f32 %v313, %v397
    %v399 = vpop.f32.mrf.mxu0
    %v400 = vpop.f32.mrf.mxu0
    %v401 = vadd.f32 %v313, %v400
    %v402 = vpop.f32.mrf.mxu0
    %403 = vdwg.mxu0
    %v404 = vmax.f32 %v398, 0.0
    %v405 = vmax.f32 %v401, 0.0
    %v406 = vpack.c.bf16 %v405, %v404
    %v407 = vld [vmem:[#allocation11] sm:$0xf]
    %v408 = vld [vmem:[#allocation11 + $0x4] sm:$0xf]
    %v409 = vld [vmem:[#allocation11 + $0x8] sm:$0xf]
    %v410 = vld [vmem:[#allocation11 + $0xc] sm:$0xf]
    %v411 = vld [vmem:[#allocation11 + $0x10] sm:$0xf]
    %v412 = vld [vmem:[#allocation11 + $0x14] sm:$0xf]
    %v413 = vld [vmem:[#allocation11 + $0x18] sm:$0xf]
    %v414 = vld [vmem:[#allocation11 + $0x1c] sm:$0xf]
    %v415 = vld [vmem:[#allocation11 + $0x20] sm:$0xf]
    %v416 = vld [vmem:[#allocation11 + $0x24] sm:$0xf]
    %v417 = vld [vmem:[#allocation11 + $0x28] sm:$0xf]
    %v418 = vld [vmem:[#allocation11 + $0x2c] sm:$0xf]
    %v419 = vld [vmem:[#allocation11 + $0x30] sm:$0xf]
    %v420 = vld [vmem:[#allocation11 + $0x34] sm:$0xf]
    %v421 = vld [vmem:[#allocation11 + $0x38] sm:$0xf]
    %v422 = vld [vmem:[#allocation11 + $0x3c] sm:$0xf]
    %v423 = vld [vmem:[%s9] sm:$0x1]
    %v425 = vlaneseq
    %v426 = vshrl.u32 %v425, 7
    %v427 = vsub.s32 0, %v426
    %v428 = vrot.slane %v423, %v427
    %v446 = vunpack.c.l.b16 %v407
    %v447 = vunpack.c.l.b16 %v408
    %v448 = vunpack.c.l.b16 %v409
    %v449 = vunpack.c.l.b16 %v410
    %v450 = vunpack.c.l.b16 %v411
    %v451 = vunpack.c.l.b16 %v412
    %v452 = vunpack.c.l.b16 %v413
    %v453 = vunpack.c.l.b16 %v414
    %v454 = vunpack.c.l.b16 %v415
    %v455 = vunpack.c.l.b16 %v416
    %v456 = vunpack.c.l.b16 %v417
    %v457 = vunpack.c.l.b16 %v418
    %v458 = vunpack.c.l.b16 %v419
    %v459 = vunpack.c.l.b16 %v420
    %v460 = vunpack.c.l.b16 %v421
    %v461 = vunpack.c.l.b16 %v422
    %v462 = vpack.c.b16 %v447, %v446
    %v463 = vpack.c.b16 %v449, %v448
    %v464 = vpack.c.b16 %v451, %v450
    %v465 = vpack.c.b16 %v453, %v452
    %v466 = vpack.c.b16 %v455, %v454
    %v467 = vpack.c.b16 %v457, %v456
    %v468 = vpack.c.b16 %v459, %v458
    %v469 = vpack.c.b16 %v461, %v460
    %478 = vmatprep.subr.bf16.mxu0 0
    %479 = vmatpush1.bf16.msra.mxu0 %v469
    %480 = vmatprep.subr.bf16.mxu0 0
    %481 = vmatpush1.bf16.msra.mxu0 %v468
    %482 = vmatprep.subr.bf16.mxu0 0
    %483 = vmatpush1.bf16.msra.mxu0 %v467
    %484 = vmatprep.subr.bf16.mxu0 0
    %485 = vmatpush1.bf16.msra.mxu0 %v466
    %486 = vmatprep.subr.bf16.mxu0 0
    %487 = vmatpush1.bf16.msra.mxu0 %v465
    %488 = vmatprep.subr.bf16.mxu0 0
    %489 = vmatpush1.bf16.msra.mxu0 %v464
    %490 = vmatprep.subr.bf16.mxu0 0
    %491 = vmatpush1.bf16.msra.mxu0 %v463
    %492 = vmatprep.subr.bf16.mxu0 0
    %493 = vmatpush1.bf16.msra.mxu0 %v462
    %494 = vmatprep.subr.bf16.mxu0 0
    %495 = vmatpush2.bf16.msra.mxu0 0
    %496 = vmatprep.subr.bf16.mxu0 0
    %497 = vmatpush2.bf16.msra.mxu0 0
    %498 = vmatprep.subr.bf16.mxu0 0
    %499 = vmatpush2.bf16.msra.mxu0 0
    %500 = vmatprep.subr.bf16.mxu0 0
    %501 = vmatpush2.bf16.msra.mxu0 0
    %502 = vmatprep.subr.bf16.mxu0 0
    %503 = vmatpush2.bf16.msra.mxu0 0
    %504 = vmatprep.subr.bf16.mxu0 0
    %505 = vmatpush2.bf16.msra.mxu0 0
    %506 = vmatprep.subr.bf16.mxu0 0
    %507 = vmatpush2.bf16.msra.mxu0 0
    %508 = vmatprep.subr.bf16.mxu0 0
    %509 = vmatpush2.bf16.msra.mxu0 0
    %510 = vmatprep.mubr.bf16.mxu0 0
    %511 = vmatmul.mubr.bf16.gmra.mxu0 %v406
    %v512 = vpop.f32.mrf.mxu0
    %v513 = vadd.f32 %v428, %v512
    %v514 = vpop.f32.mrf.mxu0
    %v515 = vpop.f32.mrf.mxu0
    %v516 = vadd.f32 %v428, %v515
    %v517 = vpop.f32.mrf.mxu0
    %518 = vdwg.mxu0
    %v519 = vtanh.pop %v513
    %v520 = vtanh.pop %v516
    %v521 = vstv %s106
    %v522 = vmul.f32 %v521, %v519
    %v523 = vmul.f32 %v521, %v520
    %v524 = vpack.c.bf16 %v523, %v522
    %v526 = vunpack.c.l.b16 %v524
    %v527 = vunpack.c.h.b16 %v524
    %v528 = vpack.c.b16 %v526, %v526
    %v529 = vpack.c.b16 %v527, %v527
    %532 = vst [vmem:[#allocation12] sm:$0xf] %v528
    %533 = vst [vmem:[#allocation12 + $0x4] sm:$0xf] %v529
    // Predicated region
    $region62: #{tpu_custom_call.1} parent=1 // pred_check
      _
    $region63: #{tpu_custom_call.1} parent=1 // pred_check_branch
      %535 = sbr.rel (0) target = $region65
    $region64: #{tpu_custom_call.1} parent=1 // pred_region
      %s537 = ssub.s32 128, 128
      %538 = vsyncadd [#allocation5], %s537
      %s539 = sshll.u32 [#allocation12], 4
      %s540 = int_to_ptr.vmem [resolvable:$true] %s539
      %545 = dma.vmem_to_hbm [thread:$0]  %s540, 128, %s10, [#allocation5], 64, 64, 4
    $region65: #{tpu_custom_call.1} parent=1 // pred_fallthru
      _
    // Predicated region
    $region66: #{tpu_custom_call.1} parent=1 // pred_check
      _
    $region67: #{tpu_custom_call.1} parent=1 // pred_check_branch
      %547 = sbr.rel (0) target = $region69
    $region68: #{tpu_custom_call.1} parent=1 // pred_region
      %548 = dma.done [#allocation5], 128
    $region69: #{tpu_custom_call.1} parent=1 // pred_fallthru
      _
    %549 = vsyncpa [#allocation4], 1
    %550 = vsyncpa [#allocation7], 1
    %551 = vsyncpa [#allocation10], 1
    %552 = vsyncpa [#allocation5], 1

</llo_original>
